<compile_context>
chip_gen: v5e
topology: v5e:2x2
jax: 0.10.0
libtpu: 0.0.40
codegen_flags: <defaults>
</compile_context>

<pallas_src>
import functools

import jax
import jax.numpy as jnp
from jax.experimental import pallas as pl
from jax.experimental.pallas import tpu as pltpu

LEAKY_SLOPE = 0.01  # nn.LeakyReLU default negative_slope
LANE = 128


def _round_up(x, m):
    return ((x + m - 1) // m) * m


def _text_model_kernel(n_layers, p_pad,
                       x_ref,      # VMEM: (TB, 2) int32 token indices
                       emb_ref,    # VMEM: (P_PAD, HP) bf16, pre-scaled by 1/E_factor
                       w_ref,      # VMEM: (L, HP, HP) bf16 (zero-padded)
                       b_ref,      # VMEM: (L, 1, HP) f32  (zero-padded)
                       o_ref):     # VMEM out: (TB, HP) f32 (lane-dense)
    tb = o_ref.shape[0]
    ids = x_ref[...]                                        # (TB, 2) int32

    # One-hot "bag of two tokens" counts; values in {0, 1, 2} (exact in bf16).
    # Indices are assumed in-range [0, p); out-of-range rows select only padded
    # zero rows (safe: produces zeros rather than garbage).
    iota = jax.lax.broadcasted_iota(jnp.int32, (tb, p_pad), 1)
    counts = ((iota == ids[:, 0:1]).astype(jnp.bfloat16) +
              (iota == ids[:, 1:2]).astype(jnp.bfloat16))   # (TB, P_PAD) bf16

    # Fused gather + add + (pre-folded 1/E_factor) scale: a single MXU op.
    h = jnp.dot(counts, emb_ref[...],
                preferred_element_type=jnp.float32)         # (TB, HP) f32

    # MLP: bf16 operands on the MXU, f32 accumulation + f32 elementwise.
    for i in range(n_layers):
        y = jnp.dot(h.astype(jnp.bfloat16), w_ref[i],
                    preferred_element_type=jnp.float32) + b_ref[i]
        if i < n_layers - 1:
            h = jnp.where(y >= 0.0, y, LEAKY_SLOPE * y)     # LeakyReLU
        else:
            h = y

    o_ref[...] = h.astype(o_ref.dtype)                      # full lane-dense tile


def pack_params(emb, weights, biases, e_factor):
    """One-time packing: pad vocab/feature dims to 128 lanes, fold 1/E_factor."""
    p, h0 = emb.shape
    dims = [h0] + [w.shape[1] for w in weights]
    hp = _round_up(max(dims), LANE)
    p_pad = _round_up(p, LANE)
    n_layers = len(weights)

    # Embedding table: pre-divide by E_factor (module semantics), pad, store bf16.
    emb_pad = jnp.zeros((p_pad, hp), jnp.bfloat16)
    emb_pad = emb_pad.at[:p, :h0].set((emb / e_factor).astype(jnp.bfloat16))

    # NOTE: uniform square padding is harmless at hp=128; if layer dims diverge
    # strongly, pack each layer to (round_up(fin,16), round_up(fout,128)) instead.
    w_packed = jnp.zeros((n_layers, hp, hp), jnp.bfloat16)
    b_packed = jnp.zeros((n_layers, 1, hp), jnp.float32)
    for i, (w, bv) in enumerate(zip(weights, biases)):
        fin, fout = w.shape
        w_packed = w_packed.at[i, :fin, :fout].set(w.astype(jnp.bfloat16))
        b_packed = b_packed.at[i, 0, :fout].set(bv)
    return emb_pad, w_packed, b_packed, hp, p_pad


def text_model_forward(x, packed, n_class, tb_cap=256):
    """x: (bs, 2) int token indices; packed: output of pack_params."""
    emb_pad, w_packed, b_packed, hp, p_pad = packed
    n_layers = w_packed.shape[0]
    bs = x.shape[0]

    x = x.astype(jnp.int32)

    # Batch tile: multiple of 8 sublanes, capped at 256 (fills the 256x256 MXU
    # on v6e/v7x; use tb_cap=128 on v5e).  Padded rows are sliced off below.
    tb = min(_round_up(bs, 8), tb_cap)
    bs_pad = _round_up(bs, tb)
    if bs_pad != bs:
        x = jnp.pad(x, ((0, bs_pad - bs), (0, 0)))
    nb = bs_pad // tb

    kernel = functools.partial(_text_model_kernel, n_layers, p_pad)

    out = pl.pallas_call(
        kernel,
        out_shape=jax.ShapeDtypeStruct((bs_pad, hp), jnp.float32),
        grid=(nb,),
        in_specs=[
            pl.BlockSpec((tb, 2), lambda i: (i, 0)),          # per-tile indices
            # Parameters stay resident in VMEM across the batch grid
            # (constant index_map -> no re-DMA between grid steps).
            pl.BlockSpec(emb_pad.shape, lambda i: (0, 0)),
            pl.BlockSpec(w_packed.shape, lambda i: (0, 0, 0)),
            pl.BlockSpec(b_packed.shape, lambda i: (0, 0, 0)),
        ],
        out_specs=pl.BlockSpec((tb, hp), lambda i: (i, 0)),   # lane-dense writeback
        compiler_params=pltpu.CompilerParams(
            dimension_semantics=("parallel",)),  # shards batch across v7x's 2 TCs
    )(x, emb_pad, w_packed, b_packed)

    out = out[:bs, :n_class]
    # .squeeze() as in the torch module (drops any size-1 dims)
    return jnp.squeeze(out)


# ----------------------------- references -----------------------------------

def _reference_f32(x, emb, weights, biases, e_factor):
    """Pure-f32 JAX reference (module semantics)."""
    E = (jnp.take(emb, x[:, 0], axis=0) + jnp.take(emb, x[:, 1], axis=0)) / e_factor
    h = E
    for i, (w, bv) in enumerate(zip(weights, biases)):
        h = h @ w + bv
        if i < len(weights) - 1:
            h = jnp.where(h >= 0, h, LEAKY_SLOPE * h)
    return jnp.squeeze(h)


def _reference_mixed(x, emb, weights, biases, e_factor):
    """Same math with bf16 MXU operands / f32 accumulation (matches kernel)."""
    emb_s = (emb / e_factor).astype(jnp.bfloat16).astype(jnp.float32)
    E = jnp.take(emb_s, x[:, 0], axis=0) + jnp.take(emb_s, x[:, 1], axis=0)
    h = E
    for i, (w, bv) in enumerate(zip(weights, biases)):
        h = jnp.dot(h.astype(jnp.bfloat16), w.astype(jnp.bfloat16),
                    preferred_element_type=jnp.float32) + bv
        if i < len(weights) - 1:
            h = jnp.where(h >= 0, h, LEAKY_SLOPE * h)
    return jnp.squeeze(h)


if __name__ == "__main__":
    # Small deterministic config consistent with the module:
    #   p (vocab) = 50, hidden_dim = [32, 64], n_class = 8, E_factor = 2.0
    p = 50
    hidden_dim = [32, 64]
    n_class = 8
    e_factor = 2.0
    pad_index = 0
    bs = 8

    key = jax.random.PRNGKey(0)
    k_emb, k_x, *k_layers = jax.random.split(key, 2 + 2 * len(hidden_dim))

    # Embedding ~ N(0, hidden_dim[0]^-0.5), padding row zeroed (as in Embedding())
    emb = jax.random.normal(k_emb, (p, hidden_dim[0]), dtype=jnp.float32) * (
        hidden_dim[0] ** -0.5
    )
    emb = emb.at[pad_index].set(0.0)

    # MLP layers: sizes hidden_dim + [n_class]; weights stored (in, out)
    layer_sizes = hidden_dim + [n_class]
    weights, biases = [], []
    for li, (fin, fout) in enumerate(zip(layer_sizes, layer_sizes[1:])):
        kw, kb = jax.random.split(k_layers[li])
        bound = 1.0 / (fin ** 0.5)
        w = jax.random.uniform(kw, (fin, fout), jnp.float32, -bound, bound)
        bv = jax.random.uniform(kb, (fout,), jnp.float32, -bound, bound)
        weights.append(w)
        biases.append(bv)

    # Inputs: LongTensor(bs, 2) of word indices
    x = jax.random.randint(k_x, (bs, 2), 0, p, dtype=jnp.int32)

    packed = pack_params(emb, weights, biases, e_factor)   # one-time packing
    out = text_model_forward(x, packed, n_class)
    out = jax.block_until_ready(out)

    ref_mixed = _reference_mixed(x, emb, weights, biases, e_factor)
    ref_f32 = _reference_f32(x, emb, weights, biases, e_factor)

    assert out.shape == (bs, n_class), out.shape
    assert jnp.allclose(out, ref_mixed, atol=1e-4, rtol=1e-4), \
        "mismatch vs mixed-precision reference"
    assert jnp.allclose(out, ref_f32, atol=5e-2, rtol=5e-2), \
        "mismatch vs f32 reference"

    print("KERNEL_OK")
</pallas_src>

<mosaic_0001>
module attributes {stable_mosaic.version = 11 : i64} {
  func.func @_text_model_kernel(%arg0: i32, %arg1: memref<8x2xi32, #tpu.memory_space<vmem>>, %arg2: memref<128x128xbf16, #tpu.memory_space<vmem>>, %arg3: memref<2x128x128xbf16, #tpu.memory_space<vmem>>, %arg4: memref<2x1x128xf32, #tpu.memory_space<vmem>>, %arg5: memref<8x128xf32, #tpu.memory_space<vmem>>) attributes {dimension_semantics = [#tpu.dimension_semantics<parallel>], iteration_bounds = array<i64: 1>, scalar_prefetch = 0 : i64, scratch_operands = 0 : i64, tpu.core_type = #tpu.core_type<tc>, window_params = [{transform_indices = @transform_0, window_bounds = array<i64: 8, 2>}, {pipeline_mode = #tpu.pipeline_mode<synchronous>, transform_indices = @transform_1, window_bounds = array<i64: 128, 128>}, {pipeline_mode = #tpu.pipeline_mode<synchronous>, transform_indices = @transform_2, window_bounds = array<i64: 2, 128, 128>}, {pipeline_mode = #tpu.pipeline_mode<synchronous>, transform_indices = @transform_3, window_bounds = array<i64: 2, 1, 128>}, {transform_indices = @transform_4, window_bounds = array<i64: 8, 128>}]} {
    %c0 = arith.constant 0 : index
    %c0_0 = arith.constant 0 : index
    %0 = vector.load %arg1[%c0, %c0_0] : memref<8x2xi32, #tpu.memory_space<vmem>>, vector<8x2xi32>
    %1 = tpu.iota {dimensions = array<i32: 1>} : vector<8x128xi32>
    %2 = vector.extract_strided_slice %0 {offsets = [0, 0], sizes = [8, 1], strides = [1, 1]} : vector<8x2xi32> to vector<8x1xi32>
    %3 = vector.broadcast %2 : vector<8x1xi32> to vector<8x128xi32>
    %4 = arith.cmpi eq, %1, %3 : vector<8x128xi32>
    %5 = arith.extui %4 : vector<8x128xi1> to vector<8x128xi32>
    %6 = arith.sitofp %5 : vector<8x128xi32> to vector<8x128xf32>
    %7 = arith.truncf %6 : vector<8x128xf32> to vector<8x128xbf16>
    %8 = vector.extract_strided_slice %0 {offsets = [0, 1], sizes = [8, 1], strides = [1, 1]} : vector<8x2xi32> to vector<8x1xi32>
    %9 = vector.broadcast %8 : vector<8x1xi32> to vector<8x128xi32>
    %10 = arith.cmpi eq, %1, %9 : vector<8x128xi32>
    %11 = arith.extui %10 : vector<8x128xi1> to vector<8x128xi32>
    %12 = arith.sitofp %11 : vector<8x128xi32> to vector<8x128xf32>
    %13 = arith.truncf %12 : vector<8x128xf32> to vector<8x128xbf16>
    %14 = arith.addf %7, %13 : vector<8x128xbf16>
    %c0_1 = arith.constant 0 : index
    %c0_2 = arith.constant 0 : index
    %15 = vector.load %arg2[%c0_1, %c0_2] : memref<128x128xbf16, #tpu.memory_space<vmem>>, vector<128x128xbf16>
    %cst = arith.constant dense<0.000000e+00> : vector<8x128xf32>
    %16 = tpu.matmul %14, %15, %cst {dimension_numbers = #tpu.dot_dimension_numbers<[1], [0], [0], [1], [0, 0, 1, 1], [], []>} : vector<8x128xbf16>, vector<128x128xbf16>, vector<8x128xf32> -> vector<8x128xf32>
    %17 = arith.truncf %16 : vector<8x128xf32> to vector<8x128xbf16>
    %c0_3 = arith.constant 0 : index
    %c0_4 = arith.constant 0 : index
    %c0_5 = arith.constant 0 : index
    %18 = vector.load %arg3[%c0_3, %c0_4, %c0_5] : memref<2x128x128xbf16, #tpu.memory_space<vmem>>, vector<1x128x128xbf16>
    %19 = vector.shape_cast %18 : vector<1x128x128xbf16> to vector<128x128xbf16>
    %cst_6 = arith.constant dense<0.000000e+00> : vector<8x128xf32>
    %20 = tpu.matmul %17, %19, %cst_6 {dimension_numbers = #tpu.dot_dimension_numbers<[1], [0], [0], [1], [0, 0, 1, 1], [], []>} : vector<8x128xbf16>, vector<128x128xbf16>, vector<8x128xf32> -> vector<8x128xf32>
    %c0_7 = arith.constant 0 : index
    %c0_8 = arith.constant 0 : index
    %c0_9 = arith.constant 0 : index
    %21 = vector.load %arg4[%c0_7, %c0_8, %c0_9] : memref<2x1x128xf32, #tpu.memory_space<vmem>>, vector<1x1x128xf32>
    %22 = vector.shape_cast %21 : vector<1x1x128xf32> to vector<1x128xf32>
    %23 = vector.broadcast %22 : vector<1x128xf32> to vector<8x128xf32>
    %24 = arith.addf %20, %23 : vector<8x128xf32>
    %cst_10 = arith.constant 0.000000e+00 : f32
    %25 = vector.broadcast %cst_10 : f32 to vector<8x128xf32>
    %26 = arith.cmpf oge, %24, %25 : vector<8x128xf32>
    %cst_11 = arith.constant 0.00999999977 : f32
    %27 = vector.broadcast %cst_11 : f32 to vector<8x128xf32>
    %28 = arith.mulf %27, %24 : vector<8x128xf32>
    %29 = arith.select %26, %24, %28 : vector<8x128xi1>, vector<8x128xf32>
    %30 = arith.truncf %29 : vector<8x128xf32> to vector<8x128xbf16>
    %c1 = arith.constant 1 : index
    %c0_12 = arith.constant 0 : index
    %c0_13 = arith.constant 0 : index
    %31 = vector.load %arg3[%c1, %c0_12, %c0_13] : memref<2x128x128xbf16, #tpu.memory_space<vmem>>, vector<1x128x128xbf16>
    %32 = vector.shape_cast %31 : vector<1x128x128xbf16> to vector<128x128xbf16>
    %cst_14 = arith.constant dense<0.000000e+00> : vector<8x128xf32>
    %33 = tpu.matmul %30, %32, %cst_14 {dimension_numbers = #tpu.dot_dimension_numbers<[1], [0], [0], [1], [0, 0, 1, 1], [], []>} : vector<8x128xbf16>, vector<128x128xbf16>, vector<8x128xf32> -> vector<8x128xf32>
    %c1_15 = arith.constant 1 : index
    %c0_16 = arith.constant 0 : index
    %c0_17 = arith.constant 0 : index
    %34 = vector.load %arg4[%c1_15, %c0_16, %c0_17] : memref<2x1x128xf32, #tpu.memory_space<vmem>>, vector<1x1x128xf32>
    %35 = vector.shape_cast %34 : vector<1x1x128xf32> to vector<1x128xf32>
    %36 = vector.broadcast %35 : vector<1x128xf32> to vector<8x128xf32>
    %37 = arith.addf %33, %36 : vector<8x128xf32>
    %c0_18 = arith.constant 0 : index
    %c0_19 = arith.constant 0 : index
    %38 = vector.load %arg5[%c0_18, %c0_19] : memref<8x128xf32, #tpu.memory_space<vmem>>, vector<8x128xf32>
    tpu.vector_store %arg5[%c0_18, %c0_19], %37 {strides = array<i32>} : memref<8x128xf32, #tpu.memory_space<vmem>>, vector<8x128xf32>,
    return
  }
  func.func @transform_0(%arg0: i32) -> (i32, i32) {
    %c0_i32 = arith.constant 0 : i32
    %c0_i32_0 = arith.constant 0 : i32
    return %arg0, %c0_i32 : i32, i32
  }
  func.func @transform_1(%arg0: i32) -> (i32, i32) {
    %c0_i32 = arith.constant 0 : i32
    %c0_i32_0 = arith.constant 0 : i32
    %c0_i32_1 = arith.constant 0 : i32
    return %c0_i32, %c0_i32_0 : i32, i32
  }
  func.func @transform_2(%arg0: i32) -> (i32, i32, i32) {
    %c0_i32 = arith.constant 0 : i32
    %c0_i32_0 = arith.constant 0 : i32
    %c0_i32_1 = arith.constant 0 : i32
    %c0_i32_2 = arith.constant 0 : i32
    return %c0_i32, %c0_i32_0, %c0_i32_1 : i32, i32, i32
  }
  func.func @transform_3(%arg0: i32) -> (i32, i32, i32) {
    %c0_i32 = arith.constant 0 : i32
    %c0_i32_0 = arith.constant 0 : i32
    %c0_i32_1 = arith.constant 0 : i32
    %c0_i32_2 = arith.constant 0 : i32
    return %c0_i32, %c0_i32_0, %c0_i32_1 : i32, i32, i32
  }
  func.func @transform_4(%arg0: i32) -> (i32, i32) {
    %c0_i32 = arith.constant 0 : i32
    %c0_i32_0 = arith.constant 0 : i32
    return %arg0, %c0_i32 : i32, i32
  }
}

</mosaic_0001>

<llo_original>
// kernel: tpu_custom_call.1
$region0: #{tpu_custom_call.1}
  #allocation0 [shape = 'u32[]', space=smem, size = 0x4, offset = 0x4, fixed_abs, tag = 'smem constant byte address 0x4 - core index']
  #allocation1 [shape = 'u32[72,128]{1,0:T(1,128)}', space=vmem, size = 0x9000, scoped, tag = 'internal scratch']
  %s0 = inlined_call_operand.vmem [shape: s32[8,2], index: 0, kind: input, shape index: {}]
  %s1 = inlined_call_operand.hbm [shape: bf16[128,128], index: 1, kind: input, shape index: {}]
  %s2 = inlined_call_operand.hbm [shape: bf16[2,128,128], index: 2, kind: input, shape index: {}]
  %s3 = inlined_call_operand.vmem [shape: f32[2,1,128], index: 3, kind: input, shape index: {}]
  %s4 = inlined_call_operand.hbm [shape: f32[8,128], index: 4, kind: output, shape index: {}]
  %s5 = sld [smem:[#allocation0]]
  $region34: #{tpu_custom_call.1} parent=0
    _
  %s7 = ssub.s32 1, %s5
  %s8 = scalar_select 0, %s7, %s5
  $region1: #{tpu_custom_call.1} parent=0
    #allocation2 [shape = 'u8[32768]{0}', space=vmem, size = 0x8000, scoped, tag = 'input window, operand 1, single buffered']
    #allocation3 [shape = 's32[1]{0}', space=sflag, size = 0x4, scoped, tag = 'scoped memory for tpu_custom_call.1']
    #allocation4 [shape = 's32[1]{0}', space=sflag, size = 0x4, scoped, tag = 'scoped memory for tpu_custom_call.1']
    #allocation5 [shape = 'u8[65536]{0}', space=vmem, size = 0x10000, scoped, tag = 'input window, operand 2, single buffered']
    #allocation6 [shape = 's32[1]{0}', space=sflag, size = 0x4, scoped, tag = 'scoped memory for tpu_custom_call.1']
    #allocation7 [shape = 'u8[4096]{0}', space=vmem, size = 0x1000, scoped, tag = 'output window, operand 0, single buffered']
    %9 = vsyncpa [#allocation3], 0
    %10 = vsyncpa [#allocation6], 0
    %11 = vsyncpa [#allocation4], 0
    // Predicated region
    $region2: #{tpu_custom_call.1} parent=1 // pred_check
      _
    $region3: #{tpu_custom_call.1} parent=1 // pred_check_branch
      %13 = sbr.rel (0) target = $region5
    $region4: #{tpu_custom_call.1} parent=1 // pred_region
      _
    $region5: #{tpu_custom_call.1} parent=1 // pred_fallthru
      _
    // Predicated region
    $region6: #{tpu_custom_call.1} parent=1 // pred_check
      _
    $region7: #{tpu_custom_call.1} parent=1 // pred_check_branch
      %15 = sbr.rel (0) target = $region9
    $region8: #{tpu_custom_call.1} parent=1 // pred_region
      %17 = vsyncadd [#allocation3], 0
      %s18 = sshll.u32 %s1, 4
      %s19 = int_to_ptr.hbm [resolvable:$true] %s18
      %s20 = sshll.u32 [#allocation2], 4
      %s21 = int_to_ptr.vmem [resolvable:$true] %s20
      %26 = dma.hbm_to_vmem [thread:$0]  %s19, 1024, %s21, [#allocation3], 64, 64, 4
    $region9: #{tpu_custom_call.1} parent=1 // pred_fallthru
      _
    // Predicated region
    $region10: #{tpu_custom_call.1} parent=1 // pred_check
      _
    $region11: #{tpu_custom_call.1} parent=1 // pred_check_branch
      %28 = sbr.rel (0) target = $region13
    $region12: #{tpu_custom_call.1} parent=1 // pred_region
      %30 = vsyncadd [#allocation6], 0
      %s31 = sshll.u32 %s2, 4
      %s32 = int_to_ptr.hbm [resolvable:$true] %s31
      %s33 = sshll.u32 [#allocation5], 4
      %s34 = int_to_ptr.vmem [resolvable:$true] %s33
      %39 = dma.hbm_to_vmem [thread:$0]  %s32, 2048, %s34, [#allocation6], 64, 64, 4
    $region13: #{tpu_custom_call.1} parent=1 // pred_fallthru
      _
    // Predicated region
    $region14: #{tpu_custom_call.1} parent=1 // pred_check
      _
    $region15: #{tpu_custom_call.1} parent=1 // pred_check_branch
      %41 = sbr.rel (0) target = $region17
    $region16: #{tpu_custom_call.1} parent=1 // pred_region
      _
    $region17: #{tpu_custom_call.1} parent=1 // pred_fallthru
      _
    // Predicated region
    $region18: #{tpu_custom_call.1} parent=1 // pred_check
      _
    $region19: #{tpu_custom_call.1} parent=1 // pred_check_branch
      %43 = sbr.rel (0) target = $region21
    $region20: #{tpu_custom_call.1} parent=1 // pred_region
      %45 = dma.done [#allocation3], 1024
    $region21: #{tpu_custom_call.1} parent=1 // pred_fallthru
      _
    // Predicated region
    $region22: #{tpu_custom_call.1} parent=1 // pred_check
      _
    $region23: #{tpu_custom_call.1} parent=1 // pred_check_branch
      %47 = sbr.rel (0) target = $region25
    $region24: #{tpu_custom_call.1} parent=1 // pred_region
      %49 = dma.done [#allocation6], 2048
    $region25: #{tpu_custom_call.1} parent=1 // pred_fallthru
      _
    %v50 = vld [vmem:[%s0] sm:$0xff]
    %v51 = vlaneseq
    %v52 = vand.u32 %v51, 127
    %53 = vset.pattern.permute.xlu0 0
    %54 = vperm.xlu0 %53, %v50
    %v55 = vpop.permute.xlu0 %54
    %vm56 = vcmp.eq.s32.totalorder %v52, %v55
    %v57 = vsel %vm56, 1, 0
    %v58 = vcvt.s32.f32 %v57
    %v59 = vpack.c.bf16 %v58, %v58
    %60 = vset.pattern.permute.xlu0 1
    %61 = vperm.xlu0 %60, %v50
    %v62 = vpop.permute.xlu0 %61
    %vm63 = vcmp.eq.s32.totalorder %v52, %v62
    %v64 = vsel %vm63, 1, 0
    %v65 = vcvt.s32.f32 %v64
    %v66 = vpack.c.bf16 %v65, %v65
    %v67 = vunpack.c.l.bf16 %v59
    %v68 = vunpack.c.l.bf16 %v66
    %v69 = vadd.f32 %v67, %v68
    %v70 = vpack.c.bf16 %v69, %v69
    %v71 = vld [vmem:[#allocation2] sm:$0xf]
    %v72 = vld [vmem:[#allocation2 + $0x4] sm:$0xf]
    %v73 = vld [vmem:[#allocation2 + $0x8] sm:$0xf]
    %v74 = vld [vmem:[#allocation2 + $0xc] sm:$0xf]
    %v75 = vld [vmem:[#allocation2 + $0x10] sm:$0xf]
    %v76 = vld [vmem:[#allocation2 + $0x14] sm:$0xf]
    %v77 = vld [vmem:[#allocation2 + $0x18] sm:$0xf]
    %v78 = vld [vmem:[#allocation2 + $0x1c] sm:$0xf]
    %v79 = vld [vmem:[#allocation2 + $0x20] sm:$0xf]
    %v80 = vld [vmem:[#allocation2 + $0x24] sm:$0xf]
    %v81 = vld [vmem:[#allocation2 + $0x28] sm:$0xf]
    %v82 = vld [vmem:[#allocation2 + $0x2c] sm:$0xf]
    %v83 = vld [vmem:[#allocation2 + $0x30] sm:$0xf]
    %v84 = vld [vmem:[#allocation2 + $0x34] sm:$0xf]
    %v85 = vld [vmem:[#allocation2 + $0x38] sm:$0xf]
    %v86 = vld [vmem:[#allocation2 + $0x3c] sm:$0xf]
    %v103 = vunpack.c.l.b16 %v71
    %v104 = vunpack.c.l.b16 %v72
    %v105 = vunpack.c.l.b16 %v73
    %v106 = vunpack.c.l.b16 %v74
    %v107 = vunpack.c.l.b16 %v75
    %v108 = vunpack.c.l.b16 %v76
    %v109 = vunpack.c.l.b16 %v77
    %v110 = vunpack.c.l.b16 %v78
    %v111 = vunpack.c.l.b16 %v79
    %v112 = vunpack.c.l.b16 %v80
    %v113 = vunpack.c.l.b16 %v81
    %v114 = vunpack.c.l.b16 %v82
    %v115 = vunpack.c.l.b16 %v83
    %v116 = vunpack.c.l.b16 %v84
    %v117 = vunpack.c.l.b16 %v85
    %v118 = vunpack.c.l.b16 %v86
    %v119 = vpack.c.b16 %v104, %v103
    %v120 = vpack.c.b16 %v106, %v105
    %v121 = vpack.c.b16 %v108, %v107
    %v122 = vpack.c.b16 %v110, %v109
    %v123 = vpack.c.b16 %v112, %v111
    %v124 = vpack.c.b16 %v114, %v113
    %v125 = vpack.c.b16 %v116, %v115
    %v126 = vpack.c.b16 %v118, %v117
    %135 = vmatpush.bf16.msra.mxu0 %v126
    %136 = vmatpush.bf16.msra.mxu0 %v125
    %137 = vmatpush.bf16.msra.mxu0 %v124
    %138 = vmatpush.bf16.msra.mxu0 %v123
    %139 = vmatpush.bf16.msra.mxu0 %v122
    %140 = vmatpush.bf16.msra.mxu0 %v121
    %141 = vmatpush.bf16.msra.mxu0 %v120
    %142 = vmatpush.bf16.msra.mxu0 %v119
    %143 = vmatmul.bf16.gmra.mxu0 %v70
    %v144 = vpop.f32.mrf.mxu0
    %v145 = vadd.f32 0.0, %v144
    %v146 = vpop.f32.mrf.mxu0
    %147 = vdwg.mxu0
    %v148 = vpack.c.bf16 %v145, %v145
    %v149 = vld [vmem:[#allocation5] sm:$0xf]
    %v150 = vld [vmem:[#allocation5 + $0x4] sm:$0xf]
    %v151 = vld [vmem:[#allocation5 + $0x8] sm:$0xf]
    %v152 = vld [vmem:[#allocation5 + $0xc] sm:$0xf]
    %v153 = vld [vmem:[#allocation5 + $0x10] sm:$0xf]
    %v154 = vld [vmem:[#allocation5 + $0x14] sm:$0xf]
    %v155 = vld [vmem:[#allocation5 + $0x18] sm:$0xf]
    %v156 = vld [vmem:[#allocation5 + $0x1c] sm:$0xf]
    %v157 = vld [vmem:[#allocation5 + $0x20] sm:$0xf]
    %v158 = vld [vmem:[#allocation5 + $0x24] sm:$0xf]
    %v159 = vld [vmem:[#allocation5 + $0x28] sm:$0xf]
    %v160 = vld [vmem:[#allocation5 + $0x2c] sm:$0xf]
    %v161 = vld [vmem:[#allocation5 + $0x30] sm:$0xf]
    %v162 = vld [vmem:[#allocation5 + $0x34] sm:$0xf]
    %v163 = vld [vmem:[#allocation5 + $0x38] sm:$0xf]
    %v164 = vld [vmem:[#allocation5 + $0x3c] sm:$0xf]
    %v165 = vld [vmem:[%s3] sm:$0x1]
    %v167 = vperm.slane %v165, 0
    %v185 = vunpack.c.l.b16 %v149
    %v186 = vunpack.c.l.b16 %v150
    %v187 = vunpack.c.l.b16 %v151
    %v188 = vunpack.c.l.b16 %v152
    %v189 = vunpack.c.l.b16 %v153
    %v190 = vunpack.c.l.b16 %v154
    %v191 = vunpack.c.l.b16 %v155
    %v192 = vunpack.c.l.b16 %v156
    %v193 = vunpack.c.l.b16 %v157
    %v194 = vunpack.c.l.b16 %v158
    %v195 = vunpack.c.l.b16 %v159
    %v196 = vunpack.c.l.b16 %v160
    %v197 = vunpack.c.l.b16 %v161
    %v198 = vunpack.c.l.b16 %v162
    %v199 = vunpack.c.l.b16 %v163
    %v200 = vunpack.c.l.b16 %v164
    %v201 = vpack.c.b16 %v186, %v185
    %v202 = vpack.c.b16 %v188, %v187
    %v203 = vpack.c.b16 %v190, %v189
    %v204 = vpack.c.b16 %v192, %v191
    %v205 = vpack.c.b16 %v194, %v193
    %v206 = vpack.c.b16 %v196, %v195
    %v207 = vpack.c.b16 %v198, %v197
    %v208 = vpack.c.b16 %v200, %v199
    %217 = vmatpush.bf16.msra.mxu0 %v208
    %218 = vmatpush.bf16.msra.mxu0 %v207
    %219 = vmatpush.bf16.msra.mxu0 %v206
    %220 = vmatpush.bf16.msra.mxu0 %v205
    %221 = vmatpush.bf16.msra.mxu0 %v204
    %222 = vmatpush.bf16.msra.mxu0 %v203
    %223 = vmatpush.bf16.msra.mxu0 %v202
    %224 = vmatpush.bf16.msra.mxu0 %v201
    %225 = vmatmul.bf16.gmra.mxu0 %v148
    %v226 = vpop.f32.mrf.mxu0
    %v227 = vadd.f32 %v167, %v226
    %v228 = vpop.f32.mrf.mxu0
    %229 = vdwg.mxu0
    %vm230 = vcmp.ge.f32.partialorder %v227, 0.0
    %v231 = vmul.f32 %v227, 0.01
    %v232 = vsel %vm230, %v227, %v231
    %v233 = vpack.c.bf16 %v232, %v232
    %s234 = scalar_lea.vmem [#allocation5], 64
    %v235 = vld [vmem:[%s234] sm:$0xf]
    %v236 = vld [vmem:[%s234 + $0x4] sm:$0xf]
    %v237 = vld [vmem:[%s234 + $0x8] sm:$0xf]
    %v238 = vld [vmem:[%s234 + $0xc] sm:$0xf]
    %v239 = vld [vmem:[%s234 + $0x10] sm:$0xf]
    %v240 = vld [vmem:[%s234 + $0x14] sm:$0xf]
    %v241 = vld [vmem:[%s234 + $0x18] sm:$0xf]
    %v242 = vld [vmem:[%s234 + $0x1c] sm:$0xf]
    %v243 = vld [vmem:[%s234 + $0x20] sm:$0xf]
    %v244 = vld [vmem:[%s234 + $0x24] sm:$0xf]
    %v245 = vld [vmem:[%s234 + $0x28] sm:$0xf]
    %v246 = vld [vmem:[%s234 + $0x2c] sm:$0xf]
    %v247 = vld [vmem:[%s234 + $0x30] sm:$0xf]
    %v248 = vld [vmem:[%s234 + $0x34] sm:$0xf]
    %v249 = vld [vmem:[%s234 + $0x38] sm:$0xf]
    %v250 = vld [vmem:[%s234 + $0x3c] sm:$0xf]
    %s251 = scalar_lea.vmem %s3, 1
    %v252 = vld [vmem:[%s251] sm:$0x1]
    %v254 = vperm.slane %v252, 0
    %v272 = vunpack.c.l.b16 %v235
    %v273 = vunpack.c.l.b16 %v236
    %v274 = vunpack.c.l.b16 %v237
    %v275 = vunpack.c.l.b16 %v238
    %v276 = vunpack.c.l.b16 %v239
    %v277 = vunpack.c.l.b16 %v240
    %v278 = vunpack.c.l.b16 %v241
    %v279 = vunpack.c.l.b16 %v242
    %v280 = vunpack.c.l.b16 %v243
    %v281 = vunpack.c.l.b16 %v244
    %v282 = vunpack.c.l.b16 %v245
    %v283 = vunpack.c.l.b16 %v246
    %v284 = vunpack.c.l.b16 %v247
    %v285 = vunpack.c.l.b16 %v248
    %v286 = vunpack.c.l.b16 %v249
    %v287 = vunpack.c.l.b16 %v250
    %v288 = vpack.c.b16 %v273, %v272
    %v289 = vpack.c.b16 %v275, %v274
    %v290 = vpack.c.b16 %v277, %v276
    %v291 = vpack.c.b16 %v279, %v278
    %v292 = vpack.c.b16 %v281, %v280
    %v293 = vpack.c.b16 %v283, %v282
    %v294 = vpack.c.b16 %v285, %v284
    %v295 = vpack.c.b16 %v287, %v286
    %304 = vmatpush.bf16.msra.mxu0 %v295
    %305 = vmatpush.bf16.msra.mxu0 %v294
    %306 = vmatpush.bf16.msra.mxu0 %v293
    %307 = vmatpush.bf16.msra.mxu0 %v292
    %308 = vmatpush.bf16.msra.mxu0 %v291
    %309 = vmatpush.bf16.msra.mxu0 %v290
    %310 = vmatpush.bf16.msra.mxu0 %v289
    %311 = vmatpush.bf16.msra.mxu0 %v288
    %312 = vmatmul.bf16.gmra.mxu0 %v233
    %v313 = vpop.f32.mrf.mxu0
    %v314 = vadd.f32 %v254, %v313
    %v315 = vpop.f32.mrf.mxu0
    %316 = vdwg.mxu0
    %317 = vst [vmem:[#allocation7] sm:$0xff] %v314
    // Predicated region
    $region26: #{tpu_custom_call.1} parent=1 // pred_check
      _
    $region27: #{tpu_custom_call.1} parent=1 // pred_check_branch
      %319 = sbr.rel (0) target = $region29
    $region28: #{tpu_custom_call.1} parent=1 // pred_region
      %321 = vsyncadd [#allocation4], 0
      %s323 = sshll.u32 [#allocation7], 4
      %s324 = int_to_ptr.vmem [resolvable:$true] %s323
      %s325 = sshll.u32 %s4, 4
      %s326 = int_to_ptr.hbm [resolvable:$true] %s325
      %328 = dma.vmem_to_hbm [thread:$0]  %s324, 128, %s326, [#allocation4]
    $region29: #{tpu_custom_call.1} parent=1 // pred_fallthru
      _
    // Predicated region
    $region30: #{tpu_custom_call.1} parent=1 // pred_check
      _
    $region31: #{tpu_custom_call.1} parent=1 // pred_check_branch
      %330 = sbr.rel (0) target = $region33
    $region32: #{tpu_custom_call.1} parent=1 // pred_region
      %332 = dma.done [#allocation4], 128
    $region33: #{tpu_custom_call.1} parent=1 // pred_fallthru
      _
    %333 = vsyncpa [#allocation3], 1
    %334 = vsyncpa [#allocation6], 1
    %335 = vsyncpa [#allocation4], 1

</llo_original>
